<compile_context>
chip_gen: v7x
topology: tpu7x:2x2x1
jax: 0.10.0
libtpu: 0.0.40
codegen_flags: <defaults>
</compile_context>

<pallas_src>
import math
import functools

import jax
import jax.numpy as jnp
from jax import lax
from jax.experimental import pallas as pl
from jax.experimental.pallas import tpu as pltpu

_INV_SQRT2 = 1.0 / math.sqrt(2.0)
_TANH_C = math.sqrt(2.0 / math.pi)

_MIN_GRID_STEPS = 8          # enough steps for double-buffering + 2-TC sharding
_VMEM_HEADROOM = 2 << 20     # compiler scratch / misc headroom


# ----------------------------------------------------------------------------
# Kernels
# ----------------------------------------------------------------------------
def _gelu_kernel_exact(x_ref, o_ref):
    # Exact GELU: x * 0.5 * (1 + erf(x / sqrt(2))).  Keep f32 compute for erf.
    # TODO(synk): v7x-only bf16 / shorter-polynomial erf variant (verify the
    # binding VLIW slot from a bundle dump before enabling).
    x = x_ref[...].astype(jnp.float32)
    y = x * 0.5 * (1.0 + lax.erf(x * _INV_SQRT2))
    o_ref[...] = y.astype(o_ref.dtype)


def _gelu_kernel_tanh(x_ref, o_ref, *, f32_compute):
    # Tanh approximation.  On v6e/v7x bf16 inputs are computed natively in
    # bf16 (bf16-capable VPU/EUP, half the vreg pressure); on v5e / unknown
    # chips (no bf16 VPU) or when f32_math is requested we upcast to f32.
    x = x_ref[...]
    if f32_compute and x.dtype != jnp.float32:
        x = x.astype(jnp.float32)
    elif not f32_compute and x.dtype not in (jnp.float32, jnp.bfloat16):
        x = x.astype(jnp.float32)
    y = 0.5 * x * (1.0 + jnp.tanh(_TANH_C * (x + 0.044715 * (x * x * x))))
    o_ref[...] = y.astype(o_ref.dtype)


# ----------------------------------------------------------------------------
# Hardware-aware sizing helpers
# ----------------------------------------------------------------------------
@functools.lru_cache(maxsize=1)
def _hw_params():
    """Return (default_block_bytes, vmem_budget_bytes, bf16_native_vpu)."""
    vmem_cap = None
    try:
        vmem_cap = int(pltpu.get_tpu_info().vmem_capacity_bytes)
    except Exception:
        vmem_cap = None

    kind = ""
    try:
        kind = jax.devices()[0].device_kind.lower()
    except Exception:
        pass

    is_v7 = ("v7" in kind) or ("tpu7" in kind) or ("7x" in kind)
    if vmem_cap is None:
        vmem_cap = (64 << 20) if is_v7 else (128 << 20)

    if vmem_cap <= (64 << 20):
        # v7x-class: 64 MiB VMEM, 2 TCs.  Keep 2*in + 2*out double buffers
        # comfortably under the ~32 MiB scoped default.
        block_target, vmem_budget = 6 << 20, 28 << 20
    else:
        # v5e / v6e class: 128 MiB VMEM.  Bigger blocks amortize the ~0.35 us
        # per-grid-step overhead.
        block_target, vmem_budget = 12 << 20, 64 << 20

    bf16_native = ("v6" in kind) or is_v7
    return block_target, vmem_budget, bf16_native


def _round_down(v, m):
    return (v // m) * m


def _choose_slab(n, last_dim):
    """Pick a lane-dense 2-D layout (rows, lanes, pad_elems).

    Preference order:
      1. a divisor of n that is a multiple of 128 (lanes in [128, 4096]),
         preferring the largest one that still leaves >= 64 rows,
      2. the original last dim if it is >= 128 (full-extent last block dim is
         always legal; stores are mostly lane-dense),
      3. pad the flattened array once to a multiple of 128 lanes (avoids the
         masked-store / (8,128) tile-padding cliff for narrow last dims).
    """
    divs = [k * 128 for k in range(1, 33) if n % (k * 128) == 0]
    if divs:
        good = [L for L in divs if n // L >= 64]
        lanes = max(good) if good else min(divs)
        return n // lanes, lanes, 0

    if last_dim >= 128:
        return n // last_dim, last_dim, 0

    lanes = 512 if n >= 512 * 64 else 128
    padded = ((n + lanes - 1) // lanes) * lanes
    return padded // lanes, lanes, padded - n


# ----------------------------------------------------------------------------
# Wrapper
# ----------------------------------------------------------------------------
@functools.partial(
    jax.jit, static_argnames=("approximate", "target_block_bytes", "f32_math"))
def gelu_pallas(x, approximate=None, target_block_bytes=None, f32_math=None):
    """Elementwise GELU on a tensor of any rank via a Pallas TPU kernel.

    f32_math=None  -> auto (f32 internal math unless the chip has a native
                      bf16 VPU/EUP, i.e. v6e/v7x, and the input is bf16).
    f32_math=True  -> always compute in f32 (matches PyTorch's internal f32
                      math for half/bf16 inputs bit-for-bit more closely).
    """
    orig_shape = x.shape
    n = x.size
    if n == 0:
        return x

    gen_block_bytes, vmem_budget, bf16_native = _hw_params()
    block_target = (target_block_bytes if target_block_bytes is not None
                    else gen_block_bytes)

    last_dim = orig_shape[-1] if x.ndim >= 1 else 1
    rows, lanes, pad = _choose_slab(n, last_dim)

    # Flatten (and optionally pad) into the lane-dense slab.  Reshape of a
    # contiguous array is metadata-only; the pad (rare, narrow-last-dim case)
    # costs one extra HBM pass but avoids masked-lane stores / tile blowup.
    if pad > 0:
        x2 = jnp.pad(x.reshape(-1), (0, pad)).reshape(rows, lanes)
    else:
        x2 = x.reshape(rows, lanes)

    itemsize = jnp.dtype(x.dtype).itemsize
    sublane = {1: 32, 2: 16, 4: 8}.get(itemsize, 8)

    # ---- row-tile (tr) selection -------------------------------------------
    if rows <= sublane:
        tr = rows  # full row extent is always a legal block dim
    else:
        # Byte-budget tile, rounded to the dtype's sublane multiple.
        tr = _round_down(min(max(1, block_target // (lanes * itemsize)), rows),
                         sublane)
        tr = max(tr, sublane)

        # Guarantee enough grid steps for real pipelining (and >= 2x the TC
        # count on v7x) whenever the tensor is big enough.
        if rows >= _MIN_GRID_STEPS * sublane:
            tr_pipe = max(sublane, _round_down(rows // _MIN_GRID_STEPS, sublane))
            tr = min(tr, tr_pipe)

        # If 4 double-buffered blocks + headroom would exceed the per-chip
        # budget, shrink the tile — never under-provision the buffers.
        per_block_budget = max(lanes * itemsize * sublane,
                               (vmem_budget - _VMEM_HEADROOM) // 4)
        tr_vmem = max(sublane,
                      _round_down(per_block_budget // (lanes * itemsize), sublane))
        tr = min(tr, tr_vmem)

    grid = (pl.cdiv(rows, tr),)  # ragged last block handled by Pallas

    block_bytes = tr * lanes * itemsize
    vmem_limit = int(min(max(4 * block_bytes + _VMEM_HEADROOM, 16 << 20),
                         vmem_budget))

    # ---- kernel / compute dtype selection ----------------------------------
    if approximate == "tanh":
        if f32_math is None:
            f32_compute = not (bf16_native and x.dtype == jnp.bfloat16)
        else:
            f32_compute = bool(f32_math)
        kernel = functools.partial(_gelu_kernel_tanh, f32_compute=f32_compute)
    else:
        kernel = _gelu_kernel_exact

    n_total = rows * lanes
    cost = pl.CostEstimate(
        flops=10 * n_total,
        transcendentals=n_total,
        bytes_accessed=2 * n_total * itemsize,
    )

    # NOTE: pipeline_mode=pl.Buffered(3) on the input spec only if a bundle
    # dump shows exposed input DMA on the short bf16-tanh path (not measured
    # here, so we keep the default 2-deep buffering).
    out2 = pl.pallas_call(
        kernel,
        out_shape=jax.ShapeDtypeStruct((rows, lanes), x.dtype),
        grid_spec=pltpu.PrefetchScalarGridSpec(
            num_scalar_prefetch=0,
            grid=grid,
            in_specs=[pl.BlockSpec((tr, lanes), lambda i: (i, 0))],
            out_specs=pl.BlockSpec((tr, lanes), lambda i: (i, 0)),
        ),
        compiler_params=pltpu.CompilerParams(
            dimension_semantics=("parallel",),
            vmem_limit_bytes=vmem_limit,
        ),
        cost_estimate=cost,
    )(x2)

    if pad > 0:
        return out2.reshape(-1)[:n].reshape(orig_shape)
    return out2.reshape(orig_shape)


# ----------------------------------------------------------------------------
# Pure-JAX reference
# ----------------------------------------------------------------------------
def gelu_reference(x, approximate=None):
    xf = x.astype(jnp.float32)
    if approximate == "tanh":
        y = 0.5 * xf * (1.0 + jnp.tanh(_TANH_C * (xf + 0.044715 * xf ** 3)))
    else:
        y = xf * 0.5 * (1.0 + lax.erf(xf * _INV_SQRT2))
    return y.astype(x.dtype)


if __name__ == "__main__":
    key = jax.random.PRNGKey(0)
    B, T, D = 2, 8, 32
    x = jax.random.normal(key, (B, T, D), dtype=jnp.float32)

    # Exact (erf) variant — matches GELU(approximate=None)
    out_exact = jax.block_until_ready(gelu_pallas(x, approximate=None))
    ref_exact = gelu_reference(x, approximate=None)
    assert out_exact.shape == x.shape and out_exact.dtype == x.dtype
    assert jnp.allclose(out_exact, ref_exact, atol=1e-5, rtol=1e-5)

    # Tanh-approximation variant — matches GELU(approximate='tanh')
    out_tanh = jax.block_until_ready(gelu_pallas(x, approximate="tanh"))
    ref_tanh = gelu_reference(x, approximate="tanh")
    assert jnp.allclose(out_tanh, ref_tanh, atol=1e-5, rtol=1e-5)

    # bf16 tanh path (chip-gated compute dtype; f32_math override available)
    xb = x.astype(jnp.bfloat16)
    out_b = jax.block_until_ready(gelu_pallas(xb, approximate="tanh"))
    ref_b = gelu_reference(xb, approximate="tanh")
    assert out_b.dtype == jnp.bfloat16
    assert jnp.allclose(out_b.astype(jnp.float32), ref_b.astype(jnp.float32),
                        atol=3e-2, rtol=3e-2)
    out_b32 = jax.block_until_ready(gelu_pallas(xb, approximate="tanh",
                                                f32_math=True))
    assert jnp.allclose(out_b32.astype(jnp.float32), ref_b.astype(jnp.float32),
                        atol=3e-2, rtol=3e-2)

    # Multi-block + ragged boundary path (66 rows of 128 lanes, 8-row tiles)
    x3 = jax.random.normal(jax.random.PRNGKey(1), (33, 256), dtype=jnp.float32)
    out3 = jax.block_until_ready(
        gelu_pallas(x3, approximate=None, target_block_bytes=8 * 1024))
    ref3 = gelu_reference(x3, approximate=None)
    assert jnp.allclose(out3, ref3, atol=1e-5, rtol=1e-5)

    # Narrow-last-dim / indivisible shape -> padded lane-dense slab path
    x4 = jax.random.normal(jax.random.PRNGKey(2), (5, 7), dtype=jnp.float32)
    out4 = jax.block_until_ready(gelu_pallas(x4, approximate="tanh"))
    ref4 = gelu_reference(x4, approximate="tanh")
    assert out4.shape == x4.shape
    assert jnp.allclose(out4, ref4, atol=1e-5, rtol=1e-5)

    print("KERNEL_OK")
</pallas_src>

<mosaic_0001>
module attributes {stable_mosaic.version = 11 : i64} {
  func.func @_gelu_kernel_exact(%arg0: i32, %arg1: memref<4x128xf32, #tpu.memory_space<vmem>>, %arg2: memref<4x128xf32, #tpu.memory_space<vmem>>) attributes {dimension_semantics = [#tpu.dimension_semantics<parallel>], iteration_bounds = array<i64: 1>, scalar_prefetch = 0 : i64, scratch_operands = 0 : i64, tpu.core_type = #tpu.core_type<tc>, window_params = [{transform_indices = @transform_0, window_bounds = array<i64: 4, 128>}, {transform_indices = @transform_1, window_bounds = array<i64: 4, 128>}]} {
    %c0 = arith.constant 0 : index
    %c0_0 = arith.constant 0 : index
    %0 = vector.load %arg1[%c0, %c0_0] : memref<4x128xf32, #tpu.memory_space<vmem>>, vector<4x128xf32>
    %cst = arith.constant 5.000000e-01 : f32
    %1 = vector.broadcast %cst : f32 to vector<4x128xf32>
    %2 = arith.mulf %0, %1 : vector<4x128xf32>
    %cst_1 = arith.constant 0.707106769 : f32
    %3 = vector.broadcast %cst_1 : f32 to vector<4x128xf32>
    %4 = arith.mulf %0, %3 : vector<4x128xf32>
    %5 = math.erf %4 : vector<4x128xf32>
    %cst_2 = arith.constant 1.000000e+00 : f32
    %6 = vector.broadcast %cst_2 : f32 to vector<4x128xf32>
    %7 = arith.addf %6, %5 : vector<4x128xf32>
    %8 = arith.mulf %2, %7 : vector<4x128xf32>
    %c0_3 = arith.constant 0 : index
    %c0_4 = arith.constant 0 : index
    %9 = vector.load %arg2[%c0_3, %c0_4] : memref<4x128xf32, #tpu.memory_space<vmem>>, vector<4x128xf32>
    tpu.vector_store %arg2[%c0_3, %c0_4], %8 {strides = array<i32>} : memref<4x128xf32, #tpu.memory_space<vmem>>, vector<4x128xf32>,
    return
  }
  func.func @transform_0(%arg0: i32) -> (i32, i32) {
    %c0_i32 = arith.constant 0 : i32
    %c0_i32_0 = arith.constant 0 : i32
    return %arg0, %c0_i32 : i32, i32
  }
  func.func @transform_1(%arg0: i32) -> (i32, i32) {
    %c0_i32 = arith.constant 0 : i32
    %c0_i32_0 = arith.constant 0 : i32
    return %arg0, %c0_i32 : i32, i32
  }
}

</mosaic_0001>

<llo_original>
// kernel: gelu_pallas.1
$region0: #{gelu_pallas.1}
  #allocation0 [shape = 'u32[]', space=smem, size = 0x4, offset = 0x4, fixed_abs, tag = 'smem constant byte address 0x4 - core index']
  #allocation1 [shape = 'u32[144,128]{1,0:T(1,128)}', space=vmem, size = 0x12000, scoped, tag = 'internal scratch']
  %s0 = inlined_call_operand.vmem [shape: f32[4,128], index: 0, kind: input, shape index: {}]
  %s1 = inlined_call_operand.vmem [shape: f32[4,128], index: 1, kind: output, shape index: {}]
  %s2 = sld [smem:[#allocation0]]
  $region14: #{gelu_pallas.1} parent=0
    _
  %s4 = ssub.s32 1, %s2
  %s5 = scalar_select 0, %s4, %s2
  // Predicated region
  $region2: #{gelu_pallas.1} parent=0 // pred_check
    _
  $region3: #{gelu_pallas.1} parent=0 // pred_check_branch
    %7 = sbr.rel (0) target = $region5
  $region4: #{gelu_pallas.1} parent=0 // pred_region
    _
  $region5: #{gelu_pallas.1} parent=0 // pred_fallthru
    _
  %v8 = vld [vmem:[%s0] sm:$0xf]
  %v9 = vmul.f32 %v8, 0.5
  %v10 = vmul.f32 %v8, 0.70710677
  %v11 = verf.f32.pop %v10
  %v12 = vadd.f32 %v11, 1.0
  %v13 = vmul.f32 %v9, %v12
  %14 = vst [vmem:[%s1] sm:$0xf] %v13
  // Predicated region
  $region6: #{gelu_pallas.1} parent=0 // pred_check
    _
  $region7: #{gelu_pallas.1} parent=0 // pred_check_branch
    %16 = sbr.rel (0) target = $region9
  $region8: #{gelu_pallas.1} parent=0 // pred_region
    _
  $region9: #{gelu_pallas.1} parent=0 // pred_fallthru
    _
  // Predicated region
  $region10: #{gelu_pallas.1} parent=0 // pred_check
    _
  $region11: #{gelu_pallas.1} parent=0 // pred_check_branch
    %18 = sbr.rel (0) target = $region13
  $region12: #{gelu_pallas.1} parent=0 // pred_region
    _
  $region13: #{gelu_pallas.1} parent=0 // pred_fallthru
    _

</llo_original>
